<compile_context>
chip_gen: v5e
topology: v5e:2x2
jax: 0.10.0
libtpu: 0.0.40
codegen_flags: <defaults>
</compile_context>

<pallas_src>
import jax
import jax.numpy as jnp
from jax.experimental import pallas as pl
from jax.experimental.pallas import tpu as pltpu


def approachnet_kernel(x_ref,      # (1, C, TN) seed features, channel-major
                       g_ref,      # (1, V, TN) precomputed 1/Exp(1) race noise
                       w1_ref,     # (C, C)     conv1 weight (C_out, C_in)
                       b1_ref,     # (C, 1)     conv1 bias
                       w2_ref,     # (V, C)     conv2 weight (V, C_in)
                       b2_ref,     # (V, 1)     conv2 bias
                       res_ref,    # (1, C, TN) relu(conv1(x))
                       score_ref,  # (1, V, TN) view scores, channel-major
                       inds_ref):  # (1, 1, TN) sampled view index (int32), lane-dense
    x = x_ref[0]                                              # (C, TN)

    # conv1 (kernel size 1) == channel matmul + bias, then ReLU.  MXU, f32 acc.
    h = jnp.dot(w1_ref[...], x, preferred_element_type=jnp.float32) + b1_ref[...]
    res = jnp.maximum(h, 0.0)                                 # (C, TN) f32
    res_ref[0] = res.astype(res_ref.dtype)

    # conv2 (kernel size 1) -> per-view scores.
    score = (jnp.dot(w2_ref[...], res.astype(w2_ref.dtype),
                     preferred_element_type=jnp.float32)
             + b2_ref[...])                                   # (V, TN) f32
    score_ref[0] = score.astype(score_ref.dtype)

    # ---- training branch: torch.multinomial(minmax_norm(score), 1) ----
    # Keep only the `- min` shift (the min-score view keeps weight exactly 0,
    # matching the PyTorch normalisation); skip the scale-invariant divide.
    # Exponential race: argmax_v w_v * (1/E_v) samples v with prob ∝ w_v.
    # (Degenerate all-equal rows give index 0; PyTorch would raise there.)
    smin = jnp.min(score, axis=0, keepdims=True)              # (1, TN)
    w = score - smin                                          # (V, TN) >= 0
    scaled = w * g_ref[0]                                     # (V, TN)

    best = jnp.max(scaled, axis=0, keepdims=True)             # (1, TN)
    num_view = scaled.shape[0]
    v_iota = jax.lax.broadcasted_iota(jnp.int32, scaled.shape, 0).astype(jnp.float32)
    idx = jnp.min(jnp.where(scaled >= best, v_iota, float(num_view)),
                  axis=0, keepdims=True)                      # (1, TN) first argmax
    inds_ref[0] = idx.astype(jnp.int32)


def _pick_tile_n(n):
    """Largest convenient lane tile (multiple of 128) that divides N."""
    for t in (512, 256, 128):
        if n % t == 0:
            return t
    return n


def init_params(key, seed_feature_dim, num_view):
    """Deterministic synthetic params matching Conv1d(C,C,1) / Conv1d(C,V,1)."""
    C, V = seed_feature_dim, num_view
    k1, k2, k3, k4 = jax.random.split(key, 4)
    bound = 1.0 / (C ** 0.5)
    return {
        "w1": jax.random.uniform(k1, (C, C), jnp.float32, -bound, bound),
        "b1": jax.random.uniform(k2, (C,),  jnp.float32, -bound, bound),
        "w2": jax.random.uniform(k3, (V, C), jnp.float32, -bound, bound),
        "b2": jax.random.uniform(k4, (V,),  jnp.float32, -bound, bound),
    }


def approach_net_forward(seed_features, params, rng_key,
                         matmul_dtype=jnp.float32):
    """seed_features: (B, C, N) float32 (PyTorch NCW convention).

    Returns (end_points, res_features) with PyTorch layouts:
      res_features (B, C, N), view_score (B, N, V), grasp_top_view_inds (B, N).
    matmul_dtype=jnp.bfloat16 enables the bf16 MXU path (v6e / v7x); bias,
    ReLU and the sampling math stay in f32.
    """
    B, C, N = seed_features.shape
    w1, b1, w2, b2 = params["w1"], params["b1"], params["w2"], params["b2"]
    V = w2.shape[0]

    tile_n = _pick_tile_n(N)
    n_tiles = N // tile_n

    # Exponential-race noise computed once by XLA; passing 1/E means the
    # kernel's sampling tail is a single multiply + two sublane reductions
    # (no PRNG, no log, no divide in-kernel).
    e = jax.random.exponential(rng_key, (B, V, N), dtype=jnp.float32)
    inv_e = 1.0 / jnp.maximum(e, 1e-20)

    x = seed_features.astype(matmul_dtype)
    w1m = w1.astype(matmul_dtype)
    w2m = w2.astype(matmul_dtype)

    res_features, score_vn, inds = pl.pallas_call(
        approachnet_kernel,
        grid=(B, n_tiles),
        in_specs=[
            pl.BlockSpec((1, C, tile_n), lambda b, j: (b, 0, j)),
            pl.BlockSpec((1, V, tile_n), lambda b, j: (b, 0, j)),
            pl.BlockSpec((C, C), lambda b, j: (0, 0)),
            pl.BlockSpec((C, 1), lambda b, j: (0, 0)),
            pl.BlockSpec((V, C), lambda b, j: (0, 0)),
            pl.BlockSpec((V, 1), lambda b, j: (0, 0)),
        ],
        out_specs=[
            pl.BlockSpec((1, C, tile_n), lambda b, j: (b, 0, j)),
            pl.BlockSpec((1, V, tile_n), lambda b, j: (b, 0, j)),
            pl.BlockSpec((1, 1, tile_n), lambda b, j: (b, 0, j)),
        ],
        out_shape=(
            jax.ShapeDtypeStruct((B, C, N), jnp.float32),   # res (NCW, no transpose)
            jax.ShapeDtypeStruct((B, V, N), jnp.float32),   # scores, channel-major
            jax.ShapeDtypeStruct((B, 1, N), jnp.int32),     # sampled view index
        ),
        compiler_params=pltpu.CompilerParams(
            dimension_semantics=("parallel", "parallel")),
    )(x, inv_e, w1m, b1.reshape(C, 1), w2m, b2.reshape(V, 1))

    # Single remaining wrapper transpose: view_score must be (B, N, V) like
    # the PyTorch `features.transpose(1, 2)`.
    view_score = jnp.transpose(score_vn, (0, 2, 1))
    end_points = {
        "view_score": view_score,                    # (B, N, V)
        "grasp_top_view_inds": inds[:, 0, :],        # (B, N) int32
    }
    return end_points, res_features                  # res already (B, C, N)


if __name__ == "__main__":
    B, C, N, V = 2, 32, 64, 16       # batch, seed_feature_dim, num_seed, num_view

    key = jax.random.PRNGKey(0)
    kx, kp, ks = jax.random.split(key, 3)
    seed_features = jax.random.normal(kx, (B, C, N), jnp.float32)   # PyTorch NCW
    params = init_params(kp, seed_feature_dim=C, num_view=V)

    end_points, res_features = approach_net_forward(seed_features, params, ks)
    jax.block_until_ready((end_points, res_features))

    # deterministic (non-sampled) outputs vs a plain-XLA reference
    ref_res = jnp.maximum(
        jnp.einsum("oc,bcn->bon", params["w1"], seed_features,
                   precision=jax.lax.Precision.HIGHEST)
        + params["b1"][None, :, None], 0.0)
    ref_score = (jnp.einsum("vc,bcn->bvn", params["w2"], ref_res,
                            precision=jax.lax.Precision.HIGHEST)
                 + params["b2"][None, :, None])

    assert res_features.shape == (B, C, N)
    assert jnp.allclose(res_features, ref_res, atol=2e-2)
    assert end_points["view_score"].shape == (B, N, V)
    assert jnp.allclose(end_points["view_score"],
                        jnp.transpose(ref_score, (0, 2, 1)), atol=2e-2)

    inds = end_points["grasp_top_view_inds"]
    assert inds.shape == (B, N) and inds.dtype == jnp.int32
    assert int(jnp.min(inds)) >= 0 and int(jnp.max(inds)) < V

    # exercise the bf16-MXU path (v6e / v7x) as well
    ep16, rf16 = approach_net_forward(seed_features, params, ks,
                                      matmul_dtype=jnp.bfloat16)
    jax.block_until_ready((ep16, rf16))
    assert rf16.shape == (B, C, N)
    assert jnp.allclose(rf16, ref_res, atol=2e-1)

    print("KERNEL_OK")
</pallas_src>

<mosaic_0001>
module attributes {stable_mosaic.version = 11 : i64} {
  func.func @approachnet_kernel(%arg0: i32, %arg1: i32, %arg2: memref<1x32x64xf32, #tpu.memory_space<vmem>>, %arg3: memref<1x16x64xf32, #tpu.memory_space<vmem>>, %arg4: memref<32x32xf32, #tpu.memory_space<vmem>>, %arg5: memref<32x1xf32, #tpu.memory_space<vmem>>, %arg6: memref<16x32xf32, #tpu.memory_space<vmem>>, %arg7: memref<16x1xf32, #tpu.memory_space<vmem>>, %arg8: memref<1x32x64xf32, #tpu.memory_space<vmem>>, %arg9: memref<1x16x64xf32, #tpu.memory_space<vmem>>, %arg10: memref<1x1x64xi32, #tpu.memory_space<vmem>>) attributes {dimension_semantics = [#tpu.dimension_semantics<parallel>, #tpu.dimension_semantics<parallel>], iteration_bounds = array<i64: 2, 1>, scalar_prefetch = 0 : i64, scratch_operands = 0 : i64, tpu.core_type = #tpu.core_type<tc>, window_params = [{transform_indices = @transform_0, window_bounds = array<i64: 1, 32, 64>}, {transform_indices = @transform_1, window_bounds = array<i64: 1, 16, 64>}, {pipeline_mode = #tpu.pipeline_mode<synchronous>, transform_indices = @transform_2, window_bounds = array<i64: 32, 32>}, {pipeline_mode = #tpu.pipeline_mode<synchronous>, transform_indices = @transform_3, window_bounds = array<i64: 32, 1>}, {pipeline_mode = #tpu.pipeline_mode<synchronous>, transform_indices = @transform_4, window_bounds = array<i64: 16, 32>}, {pipeline_mode = #tpu.pipeline_mode<synchronous>, transform_indices = @transform_5, window_bounds = array<i64: 16, 1>}, {transform_indices = @transform_6, window_bounds = array<i64: 1, 32, 64>}, {transform_indices = @transform_7, window_bounds = array<i64: 1, 16, 64>}, {transform_indices = @transform_8, window_bounds = array<i64: 1, 1, 64>}]} {
    %c0 = arith.constant 0 : index
    %c0_0 = arith.constant 0 : index
    %c0_1 = arith.constant 0 : index
    %0 = vector.load %arg2[%c0, %c0_0, %c0_1] : memref<1x32x64xf32, #tpu.memory_space<vmem>>, vector<1x32x64xf32>
    %1 = vector.shape_cast %0 : vector<1x32x64xf32> to vector<32x64xf32>
    %c0_2 = arith.constant 0 : index
    %c0_3 = arith.constant 0 : index
    %2 = vector.load %arg4[%c0_2, %c0_3] : memref<32x32xf32, #tpu.memory_space<vmem>>, vector<32x32xf32>
    %cst = arith.constant dense<0.000000e+00> : vector<32x64xf32>
    %3 = tpu.matmul %2, %1, %cst {dimension_numbers = #tpu.dot_dimension_numbers<[1], [0], [0], [1], [0, 0, 1, 1], [], []>} : vector<32x32xf32>, vector<32x64xf32>, vector<32x64xf32> -> vector<32x64xf32>
    %c0_4 = arith.constant 0 : index
    %c0_5 = arith.constant 0 : index
    %4 = vector.load %arg5[%c0_4, %c0_5] : memref<32x1xf32, #tpu.memory_space<vmem>>, vector<32x1xf32>
    %5 = vector.broadcast %4 : vector<32x1xf32> to vector<32x64xf32>
    %6 = arith.addf %3, %5 : vector<32x64xf32>
    %cst_6 = arith.constant 0.000000e+00 : f32
    %7 = vector.broadcast %cst_6 : f32 to vector<32x64xf32>
    %8 = arith.maximumf %6, %7 : vector<32x64xf32>
    %c0_7 = arith.constant 0 : index
    %c0_8 = arith.constant 0 : index
    %c0_9 = arith.constant 0 : index
    %9 = vector.load %arg8[%c0_7, %c0_8, %c0_9] : memref<1x32x64xf32, #tpu.memory_space<vmem>>, vector<1x32x64xf32>
    %10 = vector.shape_cast %9 : vector<1x32x64xf32> to vector<32x64xf32>
    %11 = vector.shape_cast %8 : vector<32x64xf32> to vector<1x32x64xf32>
    tpu.vector_store %arg8[%c0_7, %c0_8, %c0_9], %11 {strides = array<i32>} : memref<1x32x64xf32, #tpu.memory_space<vmem>>, vector<1x32x64xf32>,
    %c0_10 = arith.constant 0 : index
    %c0_11 = arith.constant 0 : index
    %12 = vector.load %arg6[%c0_10, %c0_11] : memref<16x32xf32, #tpu.memory_space<vmem>>, vector<16x32xf32>
    %cst_12 = arith.constant dense<0.000000e+00> : vector<16x64xf32>
    %13 = tpu.matmul %12, %8, %cst_12 {dimension_numbers = #tpu.dot_dimension_numbers<[1], [0], [0], [1], [0, 0, 1, 1], [], []>} : vector<16x32xf32>, vector<32x64xf32>, vector<16x64xf32> -> vector<16x64xf32>
    %c0_13 = arith.constant 0 : index
    %c0_14 = arith.constant 0 : index
    %14 = vector.load %arg7[%c0_13, %c0_14] : memref<16x1xf32, #tpu.memory_space<vmem>>, vector<16x1xf32>
    %15 = vector.broadcast %14 : vector<16x1xf32> to vector<16x64xf32>
    %16 = arith.addf %13, %15 : vector<16x64xf32>
    %c0_15 = arith.constant 0 : index
    %c0_16 = arith.constant 0 : index
    %c0_17 = arith.constant 0 : index
    %17 = vector.load %arg9[%c0_15, %c0_16, %c0_17] : memref<1x16x64xf32, #tpu.memory_space<vmem>>, vector<1x16x64xf32>
    %18 = vector.shape_cast %17 : vector<1x16x64xf32> to vector<16x64xf32>
    %19 = vector.shape_cast %16 : vector<16x64xf32> to vector<1x16x64xf32>
    tpu.vector_store %arg9[%c0_15, %c0_16, %c0_17], %19 {strides = array<i32>} : memref<1x16x64xf32, #tpu.memory_space<vmem>>, vector<1x16x64xf32>,
    %cst_18 = arith.constant dense<0x7F800000> : vector<64xf32>
    %20 = vector.multi_reduction <minimumf>, %16, %cst_18 [0] : vector<16x64xf32> to vector<64xf32>
    %21 = vector.shape_cast %20 : vector<64xf32> to vector<1x64xf32>
    %22 = vector.broadcast %21 : vector<1x64xf32> to vector<16x64xf32>
    %23 = arith.subf %16, %22 : vector<16x64xf32>
    %c0_19 = arith.constant 0 : index
    %c0_20 = arith.constant 0 : index
    %c0_21 = arith.constant 0 : index
    %24 = vector.load %arg3[%c0_19, %c0_20, %c0_21] : memref<1x16x64xf32, #tpu.memory_space<vmem>>, vector<1x16x64xf32>
    %25 = vector.shape_cast %24 : vector<1x16x64xf32> to vector<16x64xf32>
    %26 = arith.mulf %23, %25 : vector<16x64xf32>
    %cst_22 = arith.constant dense<0xFF800000> : vector<64xf32>
    %27 = vector.multi_reduction <maximumf>, %26, %cst_22 [0] : vector<16x64xf32> to vector<64xf32>
    %28 = vector.shape_cast %27 : vector<64xf32> to vector<1x64xf32>
    %29 = tpu.iota {dimensions = array<i32: 0>} : vector<16x64xi32>
    %30 = arith.sitofp %29 : vector<16x64xi32> to vector<16x64xf32>
    %31 = vector.broadcast %28 : vector<1x64xf32> to vector<16x64xf32>
    %32 = arith.cmpf oge, %26, %31 : vector<16x64xf32>
    %cst_23 = arith.constant 1.600000e+01 : f32
    %33 = vector.broadcast %cst_23 : f32 to vector<16x64xf32>
    %34 = arith.select %32, %30, %33 : vector<16x64xi1>, vector<16x64xf32>
    %cst_24 = arith.constant dense<0x7F800000> : vector<64xf32>
    %35 = vector.multi_reduction <minimumf>, %34, %cst_24 [0] : vector<16x64xf32> to vector<64xf32>
    %36 = vector.shape_cast %35 : vector<64xf32> to vector<1x64xf32>
    %37 = arith.fptosi %36 : vector<1x64xf32> to vector<1x64xi32>
    %c0_25 = arith.constant 0 : index
    %c0_26 = arith.constant 0 : index
    %c0_27 = arith.constant 0 : index
    %38 = vector.load %arg10[%c0_25, %c0_26, %c0_27] : memref<1x1x64xi32, #tpu.memory_space<vmem>>, vector<1x1x64xi32>
    %39 = vector.shape_cast %38 : vector<1x1x64xi32> to vector<1x64xi32>
    %40 = vector.shape_cast %37 : vector<1x64xi32> to vector<1x1x64xi32>
    tpu.vector_store %arg10[%c0_25, %c0_26, %c0_27], %40 {strides = array<i32>} : memref<1x1x64xi32, #tpu.memory_space<vmem>>, vector<1x1x64xi32>,
    return
  }
  func.func @transform_0(%arg0: i32, %arg1: i32) -> (i32, i32, i32) {
    %c0_i32 = arith.constant 0 : i32
    %c0_i32_0 = arith.constant 0 : i32
    return %arg0, %c0_i32, %arg1 : i32, i32, i32
  }
  func.func @transform_1(%arg0: i32, %arg1: i32) -> (i32, i32, i32) {
    %c0_i32 = arith.constant 0 : i32
    %c0_i32_0 = arith.constant 0 : i32
    return %arg0, %c0_i32, %arg1 : i32, i32, i32
  }
  func.func @transform_2(%arg0: i32, %arg1: i32) -> (i32, i32) {
    %c0_i32 = arith.constant 0 : i32
    %c0_i32_0 = arith.constant 0 : i32
    %c0_i32_1 = arith.constant 0 : i32
    return %c0_i32, %c0_i32_0 : i32, i32
  }
  func.func @transform_3(%arg0: i32, %arg1: i32) -> (i32, i32) {
    %c0_i32 = arith.constant 0 : i32
    %c0_i32_0 = arith.constant 0 : i32
    %c0_i32_1 = arith.constant 0 : i32
    return %c0_i32, %c0_i32_0 : i32, i32
  }
  func.func @transform_4(%arg0: i32, %arg1: i32) -> (i32, i32) {
    %c0_i32 = arith.constant 0 : i32
    %c0_i32_0 = arith.constant 0 : i32
    %c0_i32_1 = arith.constant 0 : i32
    return %c0_i32, %c0_i32_0 : i32, i32
  }
  func.func @transform_5(%arg0: i32, %arg1: i32) -> (i32, i32) {
    %c0_i32 = arith.constant 0 : i32
    %c0_i32_0 = arith.constant 0 : i32
    %c0_i32_1 = arith.constant 0 : i32
    return %c0_i32, %c0_i32_0 : i32, i32
  }
  func.func @transform_6(%arg0: i32, %arg1: i32) -> (i32, i32, i32) {
    %c0_i32 = arith.constant 0 : i32
    %c0_i32_0 = arith.constant 0 : i32
    return %arg0, %c0_i32, %arg1 : i32, i32, i32
  }
  func.func @transform_7(%arg0: i32, %arg1: i32) -> (i32, i32, i32) {
    %c0_i32 = arith.constant 0 : i32
    %c0_i32_0 = arith.constant 0 : i32
    return %arg0, %c0_i32, %arg1 : i32, i32, i32
  }
  func.func @transform_8(%arg0: i32, %arg1: i32) -> (i32, i32, i32) {
    %c0_i32 = arith.constant 0 : i32
    %c0_i32_0 = arith.constant 0 : i32
    return %arg0, %c0_i32, %arg1 : i32, i32, i32
  }
}

</mosaic_0001>

<llo_original>
// kernel: tpu_custom_call.1
$region0: #{tpu_custom_call.1}
  #allocation0 [shape = 'u32[]', space=smem, size = 0x4, offset = 0x4, fixed_abs, tag = 'smem constant byte address 0x4 - core index']
  #allocation1 [shape = 'u32[72,128]{1,0:T(1,128)}', space=vmem, size = 0x9000, scoped, tag = 'internal scratch']
  %s0 = inlined_call_operand.hbm [shape: f32[2,32,64], index: 0, kind: input, shape index: {}]
  %s1 = inlined_call_operand.vmem [shape: f32[2,16,64], index: 1, kind: input, shape index: {}]
  %s2 = inlined_call_operand.hbm [shape: f32[32,32], index: 2, kind: input, shape index: {}]
  %s3 = inlined_call_operand.vmem [shape: f32[32,1], index: 3, kind: input, shape index: {}]
  %s4 = inlined_call_operand.vmem [shape: f32[16,32], index: 4, kind: input, shape index: {}]
  %s5 = inlined_call_operand.vmem [shape: f32[16,1], index: 5, kind: input, shape index: {}]
  %s6 = inlined_call_operand.hbm [shape: f32[2,32,64], index: 6, kind: output, shape index: {0}]
  %s7 = inlined_call_operand.hbm [shape: f32[2,16,64], index: 7, kind: output, shape index: {1}]
  %s8 = inlined_call_operand.hbm [shape: s32[2,1,64], index: 8, kind: output, shape index: {2}]
  %9 = xla_tuple %s6, %s7, %s8
  %s10 = sld [smem:[#allocation0]]
  $region81: #{tpu_custom_call.1} parent=0
    _
  %s12 = ssub.s32 1, %s10
  %s13 = scalar_select 0, %s12, %s10
  $region1: #{tpu_custom_call.1} parent=0
    #allocation2 [shape = 'u8[32768]{0}', space=vmem, size = 0x8000, scoped, tag = 'input window, operand 0']
    #allocation3 [shape = 's32[2]{0}', space=sflag, size = 0x8, scoped, tag = 'scoped memory for tpu_custom_call.1']
    #allocation4 [shape = 's32[2]{0}', space=sflag, size = 0x8, scoped, tag = 'scoped memory for tpu_custom_call.1']
    #allocation5 [shape = 'u8[16384]{0}', space=vmem, size = 0x4000, scoped, tag = 'input window, operand 2, single buffered']
    #allocation6 [shape = 's32[1]{0}', space=sflag, size = 0x4, scoped, tag = 'scoped memory for tpu_custom_call.1']
    #allocation7 [shape = 'u8[32768]{0}', space=vmem, size = 0x8000, scoped, tag = 'output window, operand 0']
    #allocation8 [shape = 'u8[16384]{0}', space=vmem, size = 0x4000, scoped, tag = 'output window, operand 1']
    #allocation9 [shape = 's32[2]{0}', space=sflag, size = 0x8, scoped, tag = 'scoped memory for tpu_custom_call.1']
    #allocation10 [shape = 'u8[1024]{0}', space=vmem, size = 0x400, scoped, tag = 'output window, operand 2']
    %14 = vsyncpa [#allocation3], 0
    %s15 = scalar_lea.sflag [#allocation3], 1
    %16 = vsyncpa %s15, 0
    %17 = vsyncpa [#allocation6], 0
    %18 = vsyncpa [#allocation4], 0
    %s19 = scalar_lea.sflag [#allocation4], 1
    %20 = vsyncpa %s19, 0
    %21 = vsyncpa [#allocation9], 0
    %s22 = scalar_lea.sflag [#allocation9], 1
    %23 = vsyncpa %s22, 0
    loop: start=0, step=1, limit=4
    $region2: #{tpu_custom_call.1} parent=1 // loop_pre_header
      _
    $region3: #{tpu_custom_call.1} parent=1 // loop_header
      %s25 = sphi 0, %s29
      %p26 = scmp.ge.s32.totalorder %s25, 4
      %s32 = sphi 0, %s44
      %s33 = sphi 0, %s40
      %s34 = sphi 0, %s32
      %s35 = sphi 0, %s33
      %s36 = sphi 0, %s34
      %s37 = sphi 0, %s35
      %s49 = sphi 0, %s51
      %s52 = sphi 0, %s49
      %s53 = sphi 0, %s52
      %s69 = sphi 0, %s53
      %s77 = sphi 0, %s79
      %s80 = sphi 0, %s77
      %s81 = sphi 0, %s80
      %s97 = sphi 0, %s81
      %s101 = sphi 0, %s101
      %s103 = sphi 0, %s101
      %s104 = sphi 0, %s103
      %s118 = sphi 0, %s104
      %s122 = sphi 0, %s122
      %s124 = sphi 0, %s122
      %s125 = sphi 0, %s124
      %s139 = sphi 0, %s125
      %s143 = sphi 0, %s143
      %s145 = sphi 0, %s143
      %s146 = sphi 0, %s145
      %s160 = sphi 0, %s146
      %s164 = sphi 0, %s164
      %s166 = sphi 0, %s164
      %s167 = sphi 0, %s166
      %s181 = sphi 0, %s167
      %s189 = sphi 0, %s191
      %s192 = sphi 0, %s189
      %s193 = sphi 0, %s192
      %s209 = sphi 0, %s193
      %s217 = sphi 0, %s219
      %s220 = sphi 0, %s217
      %s221 = sphi 0, %s220
      %s237 = sphi 0, %s221
      %s245 = sphi 0, %s247
      %s248 = sphi 0, %s245
      %s249 = sphi 0, %s248
      %s265 = sphi 0, %s249
    $region4: #{tpu_custom_call.1} parent=1 // loop_header_branch
      %28 = sbr.rel (%p26) target = $region8
    $region5: #{tpu_custom_call.1} parent=1 // loop_body
      %s30 = ssub.s32 %s25, 1
      %s31 = ssub.s32 %s25, 2
      %s38 = sadd.s32 1, %s33
      %p39 = scmp.ge.s32.totalorder %s38, 1
      %s40 = scalar_select %p39, 0, %s38
      %s41 = sadd.s32 1, %s32
      %s42 = scalar_select %p39, %s41, %s32
      %p43 = scmp.ge.s32.totalorder %s42, 2
      %s44 = scalar_select %p43, 0, %s42
      %s45 = ssub.s32 %s32, %s44
      %s46 = ssub.s32 %s33, %s40
      %s47 = sor.u32 %s45, %s46
      %p48 = scmp.eq.s32.totalorder %s47, 0
      %s50 = sadd.s32 %s49, 1
      %s51 = scalar_select %p48, %s49, %s50
      %p54 = pneg %p48
      %p55 = scmp.eq.s32.totalorder %s25, 1
      %p56 = por %p54, %p55
      %p57 = scmp.ne.s32.totalorder %s49, %s52
      %p58 = scmp.eq.s32.totalorder %s25, 0
      %p59 = por %p57, %p58
      %p60 = scmp.ne.s32.totalorder %s49, %s52
      %p61 = scmp.eq.s32.totalorder %s30, 1
      %p62 = por %p60, %p61
      %p63 = scmp.ne.s32.totalorder %s52, %s53
      %p64 = scmp.eq.s32.totalorder %s30, 0
      %p65 = por %p63, %p64
      %p66 = scmp.ne.s32.totalorder %s52, %s53
      %p67 = scmp.eq.s32.totalorder %s31, 1
      %p68 = por %p66, %p67
      %p70 = scmp.ne.s32.totalorder %s53, %s69
      %p71 = scmp.eq.s32.totalorder %s31, 0
      %p72 = por %p70, %p71
      %s73 = ssub.s32 %s32, %s44
      %s74 = ssub.s32 %s33, %s40
      %s75 = sor.u32 %s73, %s74
      %p76 = scmp.eq.s32.totalorder %s75, 0
      %s78 = sadd.s32 %s77, 1
      %s79 = scalar_select %p76, %s77, %s78
      %p82 = pneg %p76
      %p83 = scmp.eq.s32.totalorder %s25, 1
      %p84 = por %p82, %p83
      %p85 = scmp.ne.s32.totalorder %s77, %s80
      %p86 = scmp.eq.s32.totalorder %s25, 0
      %p87 = por %p85, %p86
      %p88 = scmp.ne.s32.totalorder %s77, %s80
      %p89 = scmp.eq.s32.totalorder %s30, 1
      %p90 = por %p88, %p89
      %p91 = scmp.ne.s32.totalorder %s80, %s81
      %p92 = scmp.eq.s32.totalorder %s30, 0
      %p93 = por %p91, %p92
      %p94 = scmp.ne.s32.totalorder %s80, %s81
      %p95 = scmp.eq.s32.totalorder %s31, 1
      %p96 = por %p94, %p95
      %p98 = scmp.ne.s32.totalorder %s81, %s97
      %p99 = scmp.eq.s32.totalorder %s31, 0
      %p100 = por %p98, %p99
      %s102 = sadd.s32 %s101, 1
      %p105 = scmp.eq.s32.totalorder %s25, 1
      %p106 = scmp.ne.s32.totalorder %s101, %s103
      %p107 = scmp.eq.s32.totalorder %s25, 0
      %p108 = por %p106, %p107
      %p109 = scmp.ne.s32.totalorder %s101, %s103
      %p110 = scmp.eq.s32.totalorder %s30, 1
      %p111 = por %p109, %p110
      %p112 = scmp.ne.s32.totalorder %s103, %s104
      %p113 = scmp.eq.s32.totalorder %s30, 0
      %p114 = por %p112, %p113
      %p115 = scmp.ne.s32.totalorder %s103, %s104
      %p116 = scmp.eq.s32.totalorder %s31, 1
      %p117 = por %p115, %p116
      %p119 = scmp.ne.s32.totalorder %s104, %s118
      %p120 = scmp.eq.s32.totalorder %s31, 0
      %p121 = por %p119, %p120
      %s123 = sadd.s32 %s122, 1
      %p126 = scmp.eq.s32.totalorder %s25, 1
      %p127 = scmp.ne.s32.totalorder %s122, %s124
      %p128 = scmp.eq.s32.totalorder %s25, 0
      %p129 = por %p127, %p128
      %p130 = scmp.ne.s32.totalorder %s122, %s124
      %p131 = scmp.eq.s32.totalorder %s30, 1
      %p132 = por %p130, %p131
      %p133 = scmp.ne.s32.totalorder %s124, %s125
      %p134 = scmp.eq.s32.totalorder %s30, 0
      %p135 = por %p133, %p134
      %p136 = scmp.ne.s32.totalorder %s124, %s125
      %p137 = scmp.eq.s32.totalorder %s31, 1
      %p138 = por %p136, %p137
      %p140 = scmp.ne.s32.totalorder %s125, %s139
      %p141 = scmp.eq.s32.totalorder %s31, 0
      %p142 = por %p140, %p141
      %s144 = sadd.s32 %s143, 1
      %p147 = scmp.eq.s32.totalorder %s25, 1
      %p148 = scmp.ne.s32.totalorder %s143, %s145
      %p149 = scmp.eq.s32.totalorder %s25, 0
      %p150 = por %p148, %p149
      %p151 = scmp.ne.s32.totalorder %s143, %s145
      %p152 = scmp.eq.s32.totalorder %s30, 1
      %p153 = por %p151, %p152
      %p154 = scmp.ne.s32.totalorder %s145, %s146
      %p155 = scmp.eq.s32.totalorder %s30, 0
      %p156 = por %p154, %p155
      %p157 = scmp.ne.s32.totalorder %s145, %s146
      %p158 = scmp.eq.s32.totalorder %s31, 1
      %p159 = por %p157, %p158
      %p161 = scmp.ne.s32.totalorder %s146, %s160
      %p162 = scmp.eq.s32.totalorder %s31, 0
      %p163 = por %p161, %p162
      %s165 = sadd.s32 %s164, 1
      %p168 = scmp.eq.s32.totalorder %s25, 1
      %p169 = scmp.ne.s32.totalorder %s164, %s166
      %p170 = scmp.eq.s32.totalorder %s25, 0
      %p171 = por %p169, %p170
      %p172 = scmp.ne.s32.totalorder %s164, %s166
      %p173 = scmp.eq.s32.totalorder %s30, 1
      %p174 = por %p172, %p173
      %p175 = scmp.ne.s32.totalorder %s166, %s167
      %p176 = scmp.eq.s32.totalorder %s30, 0
      %p177 = por %p175, %p176
      %p178 = scmp.ne.s32.totalorder %s166, %s167
      %p179 = scmp.eq.s32.totalorder %s31, 1
      %p180 = por %p178, %p179
      %p182 = scmp.ne.s32.totalorder %s167, %s181
      %p183 = scmp.eq.s32.totalorder %s31, 0
      %p184 = por %p182, %p183
      %s185 = ssub.s32 %s32, %s44
      %s186 = ssub.s32 %s33, %s40
      %s187 = sor.u32 %s185, %s186
      %p188 = scmp.eq.s32.totalorder %s187, 0
      %s190 = sadd.s32 %s189, 1
      %s191 = scalar_select %p188, %s189, %s190
      %p194 = pneg %p188
      %p195 = scmp.eq.s32.totalorder %s25, 1
      %p196 = por %p194, %p195
      %p197 = scmp.ne.s32.totalorder %s189, %s192
      %p198 = scmp.eq.s32.totalorder %s25, 0
      %p199 = por %p197, %p198
      %p200 = scmp.ne.s32.totalorder %s189, %s192
      %p201 = scmp.eq.s32.totalorder %s30, 1
      %p202 = por %p200, %p201
      %p203 = scmp.ne.s32.totalorder %s192, %s193
      %p204 = scmp.eq.s32.totalorder %s30, 0
      %p205 = por %p203, %p204
      %p206 = scmp.ne.s32.totalorder %s192, %s193
      %p207 = scmp.eq.s32.totalorder %s31, 1
      %p208 = por %p206, %p207
      %p210 = scmp.ne.s32.totalorder %s193, %s209
      %p211 = scmp.eq.s32.totalorder %s31, 0
      %p212 = por %p210, %p211
      %s213 = ssub.s32 %s32, %s44
      %s214 = ssub.s32 %s33, %s40
      %s215 = sor.u32 %s213, %s214
      %p216 = scmp.eq.s32.totalorder %s215, 0
      %s218 = sadd.s32 %s217, 1
      %s219 = scalar_select %p216, %s217, %s218
      %p222 = pneg %p216
      %p223 = scmp.eq.s32.totalorder %s25, 1
      %p224 = por %p222, %p223
      %p225 = scmp.ne.s32.totalorder %s217, %s220
      %p226 = scmp.eq.s32.totalorder %s25, 0
      %p227 = por %p225, %p226
      %p228 = scmp.ne.s32.totalorder %s217, %s220
      %p229 = scmp.eq.s32.totalorder %s30, 1
      %p230 = por %p228, %p229
      %p231 = scmp.ne.s32.totalorder %s220, %s221
      %p232 = scmp.eq.s32.totalorder %s30, 0
      %p233 = por %p231, %p232
      %p234 = scmp.ne.s32.totalorder %s220, %s221
      %p235 = scmp.eq.s32.totalorder %s31, 1
      %p236 = por %p234, %p235
      %p238 = scmp.ne.s32.totalorder %s221, %s237
      %p239 = scmp.eq.s32.totalorder %s31, 0
      %p240 = por %p238, %p239
      %s241 = ssub.s32 %s32, %s44
      %s242 = ssub.s32 %s33, %s40
      %s243 = sor.u32 %s241, %s242
      %p244 = scmp.eq.s32.totalorder %s243, 0
      %s246 = sadd.s32 %s245, 1
      %s247 = scalar_select %p244, %s245, %s246
      %p250 = pneg %p244
      %p251 = scmp.eq.s32.totalorder %s25, 1
      %p252 = por %p250, %p251
      %p253 = scmp.ne.s32.totalorder %s245, %s248
      %p254 = scmp.eq.s32.totalorder %s25, 0
      %p255 = por %p253, %p254
      %p256 = scmp.ne.s32.totalorder %s245, %s248
      %p257 = scmp.eq.s32.totalorder %s30, 1
      %p258 = por %p256, %p257
      %p259 = scmp.ne.s32.totalorder %s248, %s249
      %p260 = scmp.eq.s32.totalorder %s30, 0
      %p261 = por %p259, %p260
      %p262 = scmp.ne.s32.totalorder %s248, %s249
      %p263 = scmp.eq.s32.totalorder %s31, 1
      %p264 = por %p262, %p263
      %p266 = scmp.ne.s32.totalorder %s249, %s265
      %p267 = scmp.eq.s32.totalorder %s31, 0
      %p268 = por %p266, %p267
      %p269 = scmp.le.s32.totalorder 1, %s25
      %p270 = scmp.lt.s32.totalorder %s25, 3
      %p271 = pnand %p269, %p270
      %p272 = pneg %p271
      // Predicated region
      $region9: #{tpu_custom_call.1} parent=5 // pred_check
        _
      $region10: #{tpu_custom_call.1} parent=5 // pred_check_branch
        %274 = sbr.rel (%p271) target = $region12
      $region11: #{tpu_custom_call.1} parent=5 // pred_region
        %s275 = ssub.s32 %s25, 1
        // Predicated region
        $region13: #{tpu_custom_call.1} parent=11 // pred_check
          %p276 = pneg %p114
        $region14: #{tpu_custom_call.1} parent=11 // pred_check_branch
          %278 = sbr.rel (%p276) target = $region16
        $region15: #{tpu_custom_call.1} parent=11 // pred_region
          %280 = vsyncadd [#allocation6], 0
          %s281 = sshll.u32 %s2, 4
          %s282 = int_to_ptr.hbm [resolvable:$true] %s281
          %s283 = sshll.u32 [#allocation5], 4
          %s284 = int_to_ptr.vmem [resolvable:$true] %s283
          %289 = dma.hbm_to_vmem [thread:$0]  %s282, 512, %s284, [#allocation6], 128, 128, 8
        $region16: #{tpu_custom_call.1} parent=11 // pred_fallthru
          _
        // Predicated region
        $region17: #{tpu_custom_call.1} parent=11 // pred_check
          %p290 = pneg %p135
        $region18: #{tpu_custom_call.1} parent=11 // pred_check_branch
          %292 = sbr.rel (%p290) target = $region20
        $region19: #{tpu_custom_call.1} parent=11 // pred_region
          _
        $region20: #{tpu_custom_call.1} parent=11 // pred_fallthru
          _
        // Predicated region
        $region21: #{tpu_custom_call.1} parent=11 // pred_check
          %p293 = pneg %p156
        $region22: #{tpu_custom_call.1} parent=11 // pred_check_branch
          %295 = sbr.rel (%p293) target = $region24
        $region23: #{tpu_custom_call.1} parent=11 // pred_region
          _
        $region24: #{tpu_custom_call.1} parent=11 // pred_fallthru
          _
        // Predicated region
        $region25: #{tpu_custom_call.1} parent=11 // pred_check
          %p296 = pneg %p177
        $region26: #{tpu_custom_call.1} parent=11 // pred_check_branch
          %298 = sbr.rel (%p296) target = $region28
        $region27: #{tpu_custom_call.1} parent=11 // pred_region
          _
        $region28: #{tpu_custom_call.1} parent=11 // pred_fallthru
          _
      $region12: #{tpu_custom_call.1} parent=5 // pred_fallthru
        _
      %p299 = scmp.lt.s32.totalorder %s25, 2
      // Predicated region
      $region29: #{tpu_custom_call.1} parent=5 // pred_check
        %p300 = pneg %p299
      $region30: #{tpu_custom_call.1} parent=5 // pred_check_branch
        %302 = sbr.rel (%p300) target = $region32
      $region31: #{tpu_custom_call.1} parent=5 // pred_region
        // Predicated region
        $region33: #{tpu_custom_call.1} parent=31 // pred_check
          %p303 = pneg %p59
        $region34: #{tpu_custom_call.1} parent=31 // pred_check_branch
          %305 = sbr.rel (%p303) target = $region36
        $region35: #{tpu_custom_call.1} parent=31 // pred_region
          %s306 = sand.u32 %s49, 1
          %s307 = scalar_lea.sflag [#allocation3], %s306
          %s308 = sand.u32 %s49, 1
          %s309 = smul.addr %s308, 32
          %s310 = scalar_lea.vmem [#allocation2], %s309
          %312 = vsyncadd %s307, 0
          %s313 = smul.addr %s32, 4
          %s314 = sadd.s32 %s33, %s313
          %s315 = smul.addr %s314, 8
          %s316 = scalar_lea.hbm %s0, %s315
          %s317 = sshll.u32 %s316, 4
          %s318 = int_to_ptr.hbm [resolvable:$true] %s317
          %s319 = sshll.u32 %s310, 4
          %s320 = int_to_ptr.vmem [resolvable:$true] %s319
          %325 = dma.hbm_to_vmem [thread:$0]  %s318, 512, %s320, %s307, 128, 128, 8
        $region36: #{tpu_custom_call.1} parent=31 // pred_fallthru
          _
        // Predicated region
        $region37: #{tpu_custom_call.1} parent=31 // pred_check
          %p326 = pneg %p87
        $region38: #{tpu_custom_call.1} parent=31 // pred_check_branch
          %328 = sbr.rel (%p326) target = $region40
        $region39: #{tpu_custom_call.1} parent=31 // pred_region
          %p329 = scmp.lt.s32.totalorder %s32, 1
          %s330 = scalar_select %p329, %s32, 1
          %p331 = scmp.lt.s32.totalorder %s33, 0
          %s332 = scalar_select %p331, %s33, 0
          %s333 = smul.addr %s330, 2
          %s334 = sadd.s32 %s332, %s333
          %s335 = smul.addr %s334, 8
          %s336 = scalar_lea.vmem %s1, %s335
        $region40: #{tpu_custom_call.1} parent=31 // pred_fallthru
          _
      $region32: #{tpu_custom_call.1} parent=5 // pred_fallthru
        _
      %p337 = scmp.le.s32.totalorder 1, %s25
      %p338 = scmp.lt.s32.totalorder %s25, 3
      %p339 = pnand %p337, %p338
      %p340 = pneg %p339
      // Predicated region
      $region41: #{tpu_custom_call.1} parent=5 // pred_check
        _
      $region42: #{tpu_custom_call.1} parent=5 // pred_check_branch
        %342 = sbr.rel (%p339) target = $region44
      $region43: #{tpu_custom_call.1} parent=5 // pred_region
        %s343 = ssub.s32 %s25, 1
        %s344 = sand.u32 %s52, 1
        %s345 = scalar_lea.sflag [#allocation3], %s344
        %s346 = sand.u32 %s52, 1
        %s347 = smul.addr %s346, 32
        %s348 = scalar_lea.vmem [#allocation2], %s347
        // Predicated region
        $region45: #{tpu_custom_call.1} parent=43 // pred_check
          %p349 = pneg %p65
        $region46: #{tpu_custom_call.1} parent=43 // pred_check_branch
          %351 = sbr.rel (%p349) target = $region48
        $region47: #{tpu_custom_call.1} parent=43 // pred_region
          %353 = dma.done %s345, 512
        $region48: #{tpu_custom_call.1} parent=43 // pred_fallthru
          _
        // Predicated region
        $region49: #{tpu_custom_call.1} parent=43 // pred_check
          %p354 = pneg %p114
        $region50: #{tpu_custom_call.1} parent=43 // pred_check_branch
          %356 = sbr.rel (%p354) target = $region52
        $region51: #{tpu_custom_call.1} parent=43 // pred_region
          %358 = dma.done [#allocation6], 512
        $region52: #{tpu_custom_call.1} parent=43 // pred_fallthru
          _
        %s359 = sand.u32 %s52, 1
        %s360 = scalar_lea.sflag [#allocation3], %s359
        %s361 = sand.u32 %s52, 1
        %s362 = smul.addr %s361, 32
        %s363 = scalar_lea.vmem [#allocation2], %s362
        %p364 = pneg %p65
        %p365 = pneg %p62
        %p366 = scmp.lt.s32.totalorder %s34, 1
        %s367 = scalar_select %p366, %s34, 1
        %p368 = scmp.lt.s32.totalorder %s35, 0
        %s369 = scalar_select %p368, %s35, 0
        %s370 = smul.addr %s367, 2
        %s371 = sadd.s32 %s369, %s370
        %s372 = smul.addr %s371, 8
        %s373 = scalar_lea.vmem %s1, %s372
        %p374 = pneg %p93
        %p375 = pneg %p90
        %p376 = pneg %p114
        %p377 = pneg %p111
        %p378 = pneg %p135
        %p379 = pneg %p132
        %p380 = pneg %p156
        %p381 = pneg %p153
        %p382 = pneg %p177
        %p383 = pneg %p174
        %p384 = pneg %p205
        %p385 = pneg %p202
        %s386 = sand.u32 %s192, 1
        %s387 = scalar_lea.sflag [#allocation4], %s386
        %s388 = sand.u32 %s192, 1
        %s389 = smul.addr %s388, 32
        %s390 = scalar_lea.vmem [#allocation7], %s389
        %p391 = pneg %p233
        %p392 = pneg %p230
        %s393 = sand.u32 %s30, 1
        %s394 = scalar_lea.sflag [#allocation9], %s393
        %s395 = sand.u32 %s220, 1
        %s396 = smul.addr %s395, 16
        %s397 = scalar_lea.vmem [#allocation8], %s396
        %p398 = pneg %p261
        %p399 = pneg %p258
        %s400 = sand.u32 %s30, 1
        %s401 = scalar_lea.sflag [#allocation9], %s400
        %s402 = sand.u32 %s248, 1
        %s403 = scalar_lea.vmem [#allocation10], %s402
        %p404 = scmp.lt.s32.totalorder %s34, 1
        %s405 = scalar_select %p404, %s34, 1
        %p406 = scmp.lt.s32.totalorder %s35, 0
        %s407 = scalar_select %p406, %s35, 0
        %s408 = smul.addr %s405, 2
        %s409 = sadd.s32 %s407, %s408
        %s410 = smul.addr %s409, 8
        %s411 = scalar_lea.vmem %s1, %s410
        %v412 = vld [vmem:[%s348] sm:$0xff]
        %v413 = vld [vmem:[%s348 + $0x8] sm:$0xff]
        %v414 = vld [vmem:[%s348 + $0x10] sm:$0xff]
        %v415 = vld [vmem:[%s348 + $0x18] sm:$0xff]
        %v416 = vld [vmem:[#allocation5] sm:$0xff]
        %v417 = vld [vmem:[#allocation5 + $0x8] sm:$0xff]
        %v418 = vld [vmem:[#allocation5 + $0x10] sm:$0xff]
        %v419 = vld [vmem:[#allocation5 + $0x18] sm:$0xff]
        %v420 = vld [vmem:[%s3] sm:$0xff]
        %v421 = vld [vmem:[%s3 + $0x8] sm:$0xff]
        %v422 = vld [vmem:[%s3 + $0x10] sm:$0xff]
        %v423 = vld [vmem:[%s3 + $0x18] sm:$0xff]
        %425 = vset.pattern.permute.xlu0 0
        %426 = vperm.xlu0 %425, %v420
        %v427 = vpop.permute.xlu0 %426
        %430 = vset.pattern.permute.xlu0 0
        %431 = vperm.xlu0 %430, %v421
        %v432 = vpop.permute.xlu0 %431
        %435 = vset.pattern.permute.xlu0 0
        %436 = vperm.xlu0 %435, %v422
        %v437 = vpop.permute.xlu0 %436
        %440 = vset.pattern.permute.xlu0 0
        %441 = vperm.xlu0 %440, %v423
        %v442 = vpop.permute.xlu0 %441
        %vm444 = vcmask 261120
        %v446 = vsel %vm444, %v416, 0
        %v449 = vsel %vm444, %v417, 0
        %v452 = vsel %vm444, %v418, 0
        %v455 = vsel %vm444, %v419, 0
        %457 = vmatpush.msra.mxu0 0.0
        %458 = vmatpush.msra.mxu0 0.0
        %459 = vmatpush.msra.mxu0 0.0
        %460 = vmatpush.msra.mxu0 0.0
        %461 = vmatpush.msra.mxu0 0.0
        %462 = vmatpush.msra.mxu0 0.0
        %463 = vmatpush.msra.mxu0 0.0
        %464 = vmatpush.msra.mxu0 0.0
        %465 = vmatpush.msra.mxu0 0.0
        %466 = vmatpush.msra.mxu0 0.0
        %467 = vmatpush.msra.mxu0 0.0
        %468 = vmatpush.msra.mxu0 0.0
        %469 = vmatpush.msra.mxu0 %v415
        %470 = vmatpush.msra.mxu0 %v414
        %471 = vmatpush.msra.mxu0 %v413
        %472 = vmatpush.msra.mxu0 %v412
        %473 = vmatmul.f32.gmra.mxu0 %v446
        %v474 = vpop.f32.mrf.mxu0
        %v475 = vadd.f32 %v427, %v474
        %476 = vmatmul.f32.gmra.mxu0 %v449
        %v477 = vpop.f32.mrf.mxu0
        %v478 = vadd.f32 %v432, %v477
        %479 = vmatmul.f32.gmra.mxu0 %v452
        %v480 = vpop.f32.mrf.mxu0
        %v481 = vadd.f32 %v437, %v480
        %482 = vmatmul.f32.gmra.mxu0 %v455
        %v483 = vpop.f32.mrf.mxu0
        %v484 = vadd.f32 %v442, %v483
        %485 = vdwg.mxu0
        %v486 = vmax.f32 %v475, 0.0
        %v487 = vmax.f32 %v478, 0.0
        %v488 = vmax.f32 %v481, 0.0
        %v489 = vmax.f32 %v484, 0.0
        %vm490 = vcmask 523264
        %491 = vst.msk [vmem:[%s390] sm:$0xff] %vm490, %v486
        %492 = vst.msk [vmem:[%s390 + $0x8] sm:$0xff] %vm490, %v487
        %493 = vst.msk [vmem:[%s390 + $0x10] sm:$0xff] %vm490, %v488
        %494 = vst.msk [vmem:[%s390 + $0x18] sm:$0xff] %vm490, %v489
        %v495 = vld [vmem:[%s4] sm:$0xff]
        %v496 = vld [vmem:[%s4 + $0x8] sm:$0xff]
        %v497 = vld [vmem:[%s5] sm:$0xff]
        %v498 = vld [vmem:[%s5 + $0x8] sm:$0xff]
        %500 = vset.pattern.permute.xlu0 0
        %501 = vperm.xlu0 %500, %v497
        %v502 = vpop.permute.xlu0 %501
        %505 = vset.pattern.permute.xlu0 0
        %506 = vperm.xlu0 %505, %v498
        %v507 = vpop.permute.xlu0 %506
        %v510 = vsel %vm444, %v495, 0
        %v513 = vsel %vm444, %v496, 0
        %515 = vmatpush.msra.mxu0 0.0
        %516 = vmatpush.msra.mxu0 0.0
        %517 = vmatpush.msra.mxu0 0.0
        %518 = vmatpush.msra.mxu0 0.0
        %519 = vmatpush.msra.mxu0 0.0
        %520 = vmatpush.msra.mxu0 0.0
        %521 = vmatpush.msra.mxu0 0.0
        %522 = vmatpush.msra.mxu0 0.0
        %523 = vmatpush.msra.mxu0 0.0
        %524 = vmatpush.msra.mxu0 0.0
        %525 = vmatpush.msra.mxu0 0.0
        %526 = vmatpush.msra.mxu0 0.0
        %527 = vmatpush.msra.mxu0 %v489
        %528 = vmatpush.msra.mxu0 %v488
        %529 = vmatpush.msra.mxu0 %v487
        %530 = vmatpush.msra.mxu0 %v486
        %531 = vmatmul.f32.gmra.mxu0 %v510
        %v532 = vpop.f32.mrf.mxu0
        %v533 = vadd.f32 %v502, %v532
        %534 = vmatmul.f32.gmra.mxu0 %v513
        %v535 = vpop.f32.mrf.mxu0
        %v536 = vadd.f32 %v507, %v535
        %537 = vdwg.mxu0
        %538 = vst.msk [vmem:[%s397] sm:$0xff] %vm490, %v533
        %539 = vst.msk [vmem:[%s397 + $0x8] sm:$0xff] %vm490, %v536
        %v540 = vsel %vm490, %v533, inf
        %v541 = vsel %vm490, %v536, inf
        %v542 = vmin.f32 %v540, %v541
        %v543 = vrot.slane %v542, 4
        %v544 = vmin.f32 %v542, %v543
        %v545 = vrot.slane %v544, 2
        %v546 = vmin.f32 %v544, %v545
        %v547 = vrot.slane %v546, 1
        %v548 = vmin.f32 %v546, %v547
        %v549 = vsub.f32 %v533, %v548
        %v550 = vsub.f32 %v536, %v548
        %v551 = vld [vmem:[%s411] sm:$0xff]
        %v552 = vld [vmem:[%s411 + $0x8] sm:$0xff]
        %v553 = vmul.f32 %v549, %v551
        %v554 = vmul.f32 %v550, %v552
        %v555 = vsel %vm490, %v553, -inf
        %v556 = vsel %vm490, %v554, -inf
        %v557 = vmax.f32 %v555, %v556
        %v558 = vrot.slane %v557, 4
        %v559 = vmax.f32 %v557, %v558
        %v560 = vrot.slane %v559, 2
        %v561 = vmax.f32 %v559, %v560
        %v562 = vrot.slane %v561, 1
        %v563 = vmax.f32 %v561, %v562
        %v564 = vlaneseq
        %v565 = vshrl.u32 %v564, 7
        %v566 = vadd.s32 %v565, 8
        %v567 = vcvt.s32.f32 %v565
        %v568 = vcvt.s32.f32 %v566
        %vm569 = vcmp.ge.f32.partialorder %v553, %v563
        %vm570 = vcmp.ge.f32.partialorder %v554, %v563
        %v571 = vsel %vm569, %v567, 16.0
        %v572 = vsel %vm570, %v568, 16.0
        %v573 = vsel %vm490, %v571, inf
        %v574 = vsel %vm490, %v572, inf
        %v575 = vmin.f32 %v573, %v574
        %v576 = vrot.slane %v575, 4
        %v577 = vmin.f32 %v575, %v576
        %v578 = vrot.slane %v577, 2
        %v579 = vmin.f32 %v577, %v578
        %v580 = vrot.slane %v579, 1
        %v581 = vmin.f32 %v579, %v580
        %v582 = vcvt.f32.s32.to.zero.pseudo %v581
        %vm583 = vcmask 516096
        %584 = vst.msk [vmem:[%s403] sm:$0x1] %vm583, %v582
        %s585 = sand.u32 %s192, 1
        %s586 = scalar_lea.sflag [#allocation4], %s585
        %s587 = sand.u32 %s192, 1
        %s588 = smul.addr %s587, 32
        %s589 = scalar_lea.vmem [#allocation7], %s588
        %s590 = sand.u32 %s30, 1
        %s591 = scalar_lea.sflag [#allocation9], %s590
        %s592 = sand.u32 %s220, 1
        %s593 = smul.addr %s592, 16
        %s594 = scalar_lea.vmem [#allocation8], %s593
        %s595 = sand.u32 %s30, 1
        %s596 = scalar_lea.sflag [#allocation9], %s595
        %s597 = sand.u32 %s248, 1
        %s598 = scalar_lea.vmem [#allocation10], %s597
        // Predicated region
        $region53: #{tpu_custom_call.1} parent=43 // pred_check
          %p599 = pneg %p202
        $region54: #{tpu_custom_call.1} parent=43 // pred_check_branch
          %601 = sbr.rel (%p599) target = $region56
        $region55: #{tpu_custom_call.1} parent=43 // pred_region
          %603 = vsyncadd %s586, 0
          %s604 = smul.addr %s34, 4
          %s605 = sadd.s32 %s35, %s604
          %s606 = smul.addr %s605, 8
          %s607 = scalar_lea.hbm %s6, %s606
          %s608 = sshll.u32 %s589, 4
          %s609 = int_to_ptr.vmem [resolvable:$true] %s608
          %s610 = sshll.u32 %s607, 4
          %s611 = int_to_ptr.hbm [resolvable:$true] %s610
          %616 = dma.vmem_to_hbm [thread:$0]  %s609, 512, %s611, %s586, 128, 128, 8
        $region56: #{tpu_custom_call.1} parent=43 // pred_fallthru
          _
        // Predicated region
        $region57: #{tpu_custom_call.1} parent=43 // pred_check
          %p617 = pneg %p230
        $region58: #{tpu_custom_call.1} parent=43 // pred_check_branch
          %619 = sbr.rel (%p617) target = $region60
        $region59: #{tpu_custom_call.1} parent=43 // pred_region
          %621 = vsyncadd %s591, 0
          %s622 = smul.addr %s34, 2
          %s623 = sadd.s32 %s35, %s622
          %s624 = smul.addr %s623, 8
          %s625 = scalar_lea.hbm %s7, %s624
          %s626 = sshll.u32 %s594, 4
          %s627 = int_to_ptr.vmem [resolvable:$true] %s626
          %s628 = sshll.u32 %s625, 4
          %s629 = int_to_ptr.hbm [resolvable:$true] %s628
          %634 = dma.vmem_to_hbm [thread:$0]  %s627, 256, %s629, %s591, 128, 128, 8
        $region60: #{tpu_custom_call.1} parent=43 // pred_fallthru
          _
        // Predicated region
        $region61: #{tpu_custom_call.1} parent=43 // pred_check
          %p635 = pneg %p258
        $region62: #{tpu_custom_call.1} parent=43 // pred_check_branch
          %637 = sbr.rel (%p635) target = $region64
        $region63: #{tpu_custom_call.1} parent=43 // pred_region
          %639 = vsyncadd %s596, 0
          %s640 = sadd.s32 %s35, %s34
          %s641 = scalar_lea.hbm %s8, %s640
          %s643 = sshll.u32 %s598, 4
          %s644 = int_to_ptr.vmem [resolvable:$true] %s643
          %s645 = sshll.u32 %s641, 4
          %s646 = int_to_ptr.hbm [resolvable:$true] %s645
          %648 = dma.vmem_to_hbm [thread:$0]  %s644, 16, %s646, %s596
        $region64: #{tpu_custom_call.1} parent=43 // pred_fallthru
          _
      $region44: #{tpu_custom_call.1} parent=5 // pred_fallthru
        _
      %p649 = scmp.le.s32.totalorder 2, %s25
      // Predicated region
      $region65: #{tpu_custom_call.1} parent=5 // pred_check
        %p650 = pneg %p649
      $region66: #{tpu_custom_call.1} parent=5 // pred_check_branch
        %652 = sbr.rel (%p650) target = $region68
      $region67: #{tpu_custom_call.1} parent=5 // pred_region
        %s653 = ssub.s32 %s25, 2
        // Predicated region
        $region69: #{tpu_custom_call.1} parent=67 // pred_check
          %p654 = pneg %p208
        $region70: #{tpu_custom_call.1} parent=67 // pred_check_branch
          %656 = sbr.rel (%p654) target = $region72
        $region71: #{tpu_custom_call.1} parent=67 // pred_region
          %s657 = sand.u32 %s193, 1
          %s658 = scalar_lea.sflag [#allocation4], %s657
          %s659 = sand.u32 %s193, 1
          %s660 = smul.addr %s659, 32
          %s661 = scalar_lea.vmem [#allocation7], %s660
          %663 = dma.done %s658, 512
        $region72: #{tpu_custom_call.1} parent=67 // pred_fallthru
          _
        // Predicated region
        $region73: #{tpu_custom_call.1} parent=67 // pred_check
          %p664 = pneg %p236
        $region74: #{tpu_custom_call.1} parent=67 // pred_check_branch
          %666 = sbr.rel (%p664) target = $region76
        $region75: #{tpu_custom_call.1} parent=67 // pred_region
          %s667 = sand.u32 %s31, 1
          %s668 = scalar_lea.sflag [#allocation9], %s667
          %s669 = sand.u32 %s221, 1
          %s670 = smul.addr %s669, 16
          %s671 = scalar_lea.vmem [#allocation8], %s670
          %673 = dma.done %s668, 256
        $region76: #{tpu_custom_call.1} parent=67 // pred_fallthru
          _
        // Predicated region
        $region77: #{tpu_custom_call.1} parent=67 // pred_check
          %p674 = pneg %p264
        $region78: #{tpu_custom_call.1} parent=67 // pred_check_branch
          %676 = sbr.rel (%p674) target = $region80
        $region79: #{tpu_custom_call.1} parent=67 // pred_region
          %s677 = sand.u32 %s31, 1
          %s678 = scalar_lea.sflag [#allocation9], %s677
          %s679 = sand.u32 %s249, 1
          %s680 = scalar_lea.vmem [#allocation10], %s679
          %682 = dma.done %s678, 16
        $region80: #{tpu_custom_call.1} parent=67 // pred_fallthru
          _
      $region68: #{tpu_custom_call.1} parent=5 // pred_fallthru
        _
    $region6: #{tpu_custom_call.1} parent=1 // loop_footer
      %s29 = sadd.s32 1, %s25
    $region7: #{tpu_custom_call.1} parent=1 // loop_footer_branch
      %24 = sbr.rel target = $region3
    $region8: #{tpu_custom_call.1} parent=1 // loop_exit
      _
    %683 = vsyncpa [#allocation3], 1
    %s684 = scalar_lea.sflag [#allocation3], 1
    %685 = vsyncpa %s684, 1
    %686 = vsyncpa [#allocation6], 1
    %687 = vsyncpa [#allocation4], 1
    %s688 = scalar_lea.sflag [#allocation4], 1
    %689 = vsyncpa %s688, 1
    %690 = vsyncpa [#allocation9], 1
    %s691 = scalar_lea.sflag [#allocation9], 1
    %692 = vsyncpa %s691, 1

</llo_original>
